<compile_context>
chip_gen: v7x
topology: tpu7x:2x2x1
jax: 0.10.0
libtpu: 0.0.40
codegen_flags: <defaults>
</compile_context>

<pallas_src>
import jax
import jax.numpy as jnp
from jax.experimental import pallas as pl
from jax.experimental.pallas import tpu as pltpu


# ----------------------- kernel 1: masked mean-pooling ----------------------

def mean_pool_kernel(emb_ref, mask_ref, pooled_ref):
    """Masked mean pooling over the sequence axis for one batch tile.

    emb_ref   : [TB, S, E]  token embeddings (native dtype; f32 accumulation)
    mask_ref  : [TB, S]     attention mask as f32 (0.0 / 1.0)
    pooled_ref: [TB, E]     f32 sentence embeddings
    """
    emb = emb_ref[...].astype(jnp.float32)                   # accumulate in f32
    mask = mask_ref[...]
    masked = jnp.where(mask[..., None] != 0.0, emb, 0.0)     # masked_fill(~mask, 0)
    summed = jnp.sum(masked, axis=1)                         # [TB, E]
    counts = jnp.sum(mask, axis=1, keepdims=True)            # [TB, 1]
    # Guard all-zero masks (torch reference would emit inf/NaN here).
    counts = jnp.maximum(counts, 1.0)
    pooled_ref[...] = summed * pl.reciprocal(counts, approx=False)


# -------------------- kernel 2: O-tiled linear transform --------------------

def transform_kernel(pooled_ref, w_ref, b_ref, out_ref):
    """past_key_values tile = pooled @ W_tile + b_tile.

    pooled_ref: [B_pad, E]       f32 pooled embeddings (tiny, resident)
    w_ref     : [1, E, TILE_O]   contiguous weight tile (bf16 stream)
    b_ref     : [1, TILE_O]      bias tile (f32)
    out_ref   : [B_pad, TILE_O]  f32 output tile
    """
    pooled = pooled_ref[...].astype(w_ref.dtype)   # cast only at the MXU input
    out = jnp.dot(pooled, w_ref[0],
                  preferred_element_type=jnp.float32) + b_ref[...]
    out_ref[...] = out.astype(out_ref.dtype)


# --------------------------------- wrapper ----------------------------------

def _largest_tile(total, cap, step=128):
    """Largest divisor of `total` that is a multiple of `step` and <= cap."""
    cap = min(cap, total)
    best = step
    t = step
    while t <= cap:
        if total % t == 0:
            best = t
        t += step
    return best


def mem_prefix_encoder_pallas(token_embeddings, attention_mask, weight, bias,
                              *, weight_dtype=jnp.bfloat16, max_tile_o=None):
    """mean_pooling + transform as two Pallas kernels.

    token_embeddings: [B, S, E]  (outputs[0] of the embedding model, any float dtype)
    attention_mask  : [B, S]     0/1 mask
    weight          : [E, O]     transform weight (torch Linear weight, transposed)
    bias            : [O]        transform bias
    returns         : [B, O]     past_key_values (f32)
    """
    B, S, E = token_embeddings.shape
    E_w, O = weight.shape
    assert E_w == E
    assert O % 128 == 0, "output dim must be a multiple of the 128-lane width"

    # Per-generation VMEM budget: ~85% of physical capacity (v5e/v6e 128 MiB,
    # v7x 64 MiB), leaving headroom for compiler-internal scratch.
    try:
        vmem_cap = int(pltpu.get_tpu_info().vmem_capacity_bytes)
    except Exception:
        vmem_cap = 64 * 1024 * 1024           # conservative (v7x-sized) fallback
    vmem_budget = int(vmem_cap * 0.85)

    # Pad batch to a multiple of 8 -> sublane-dense MXU results, unmasked stores.
    B_pad = ((B + 7) // 8) * 8
    pad_b = B_pad - B
    emb = token_embeddings                     # keep native dtype (no f32 upcast)
    mask_f = attention_mask.astype(jnp.float32)
    if pad_b:
        emb = jnp.pad(emb, ((0, pad_b), (0, 0), (0, 0)))
        mask_f = jnp.pad(mask_f, ((0, pad_b), (0, 0)))   # zero rows; guarded in-kernel

    emb_itemsize = jnp.dtype(emb.dtype).itemsize
    w_itemsize = jnp.dtype(weight_dtype).itemsize

    # ---------------- stage 1: masked mean-pool ----------------
    def pool_block_bytes(tb):
        return 2 * (tb * S * E * emb_itemsize + tb * S * 4 + tb * E * 4)

    tb = B_pad if pool_block_bytes(B_pad) <= vmem_budget else 8

    pooled = pl.pallas_call(
        mean_pool_kernel,
        out_shape=jax.ShapeDtypeStruct((B_pad, E), jnp.float32),
        grid=(B_pad // tb,),
        in_specs=[
            pl.BlockSpec((tb, S, E), lambda i: (i, 0, 0)),
            pl.BlockSpec((tb, S), lambda i: (i, 0)),
        ],
        out_specs=pl.BlockSpec((tb, E), lambda i: (i, 0)),
        compiler_params=pltpu.CompilerParams(
            dimension_semantics=("parallel",),
            vmem_limit_bytes=vmem_budget),
        cost_estimate=pl.CostEstimate(
            flops=3 * B_pad * S * E,
            transcendentals=0,
            bytes_accessed=(B_pad * S * E * emb_itemsize + B_pad * S * 4
                            + B_pad * E * 4)),
    )(emb, mask_f)

    # ---------------- stage 2: O-tiled linear transform ----------------
    # Per-lane VMEM cost: double-buffered W tile (bf16) + output tile + bias.
    per_lane = 2 * E * w_itemsize + 2 * B_pad * 4 + 2 * 4
    fixed = 2 * B_pad * E * 4 + (2 << 20)        # resident pooled input + headroom
    max_lanes = max((vmem_budget - fixed) // per_lane, 128)
    if max_tile_o is not None:
        max_lanes = min(max_lanes, max_tile_o)
    max_lanes = max((max_lanes // 128) * 128, 128)
    tile_o = _largest_tile(O, max_lanes)
    num_o_tiles = O // tile_o

    # Pre-reshape W once so each [E, tile_o] tile is a single contiguous DMA,
    # streamed in bf16 with f32 accumulation on the MXU.
    w_tiles = (weight.astype(weight_dtype)
               .reshape(E, num_o_tiles, tile_o)
               .transpose(1, 0, 2))                          # [num_o_tiles, E, tile_o]
    bias2d = bias.astype(jnp.float32).reshape(1, O)

    out_padded = pl.pallas_call(
        transform_kernel,
        out_shape=jax.ShapeDtypeStruct((B_pad, O), jnp.float32),
        grid=(num_o_tiles,),
        in_specs=[
            pl.BlockSpec((B_pad, E), lambda j: (0, 0)),          # tiny, resident
            pl.BlockSpec((1, E, tile_o), lambda j: (j, 0, 0)),   # contiguous W tile
            pl.BlockSpec((1, tile_o), lambda j: (0, j)),
        ],
        out_specs=pl.BlockSpec((B_pad, tile_o), lambda j: (0, j)),
        compiler_params=pltpu.CompilerParams(
            dimension_semantics=("parallel",),   # no cross-tile state -> megacore OK
            vmem_limit_bytes=vmem_budget),
        cost_estimate=pl.CostEstimate(
            flops=2 * B_pad * E * O,
            transcendentals=0,
            bytes_accessed=E * O * w_itemsize + B_pad * E * 4 + B_pad * O * 4),
    )(pooled, w_tiles, bias2d)

    return out_padded[:B]


# ---------------------- synthetic "embedding model" -------------------------

def synthetic_embedding_model(input_ids, token_type_ids, tok_table, type_table):
    """Deterministic stand-in for AutoModel(...)[0]: returns [B, S, E]."""
    return tok_table[input_ids] + type_table[token_type_ids]


# ----------------------------------- main -----------------------------------

if __name__ == "__main__":
    # Small config implied by the module's __init__.
    B = 2                    # batch
    S = 8                    # sequence length (embedding_cutoff_len)
    E = 32                   # embedding_dim
    token_dim = 16
    num_layers = 2
    num_virtual_tokens = 8
    O = num_virtual_tokens * num_layers * 2 * token_dim   # 512
    VOCAB = 64
    NUM_TYPES = 2

    key = jax.random.PRNGKey(0)
    k_tok, k_type, k_w, k_b, k_ids, k_types = jax.random.split(key, 6)

    # Deterministic parameter init.
    tok_table = jax.random.normal(k_tok, (VOCAB, E), dtype=jnp.float32) * 0.02
    type_table = jax.random.normal(k_type, (NUM_TYPES, E), dtype=jnp.float32) * 0.02
    transform_w = jax.random.normal(k_w, (E, O), dtype=jnp.float32) * 0.02
    transform_b = jax.random.normal(k_b, (O,), dtype=jnp.float32) * 0.02

    # Deterministic example inputs.
    history_input_ids = jax.random.randint(k_ids, (B, S), 0, VOCAB, dtype=jnp.int32)
    history_token_type_ids = jax.random.randint(k_types, (B, S), 0, NUM_TYPES,
                                                dtype=jnp.int32)
    # attention mask: first example fully valid, second has 3 padding tokens.
    history_attention_mask = jnp.array(
        [[1] * S, [1] * (S - 3) + [0] * 3], dtype=jnp.int32)

    # Glue: synthetic embedding model output (stand-in for outputs[0]).
    token_embeddings = synthetic_embedding_model(
        history_input_ids, history_token_type_ids, tok_table, type_table)

    # Pallas kernels: mean_pooling + transform.  max_tile_o=256 forces two O
    # tiles at this toy size so the tiled / megacore-parallel path is exercised.
    past_key_values = mem_prefix_encoder_pallas(
        token_embeddings, history_attention_mask, transform_w, transform_b,
        max_tile_o=256)
    past_key_values = jax.block_until_ready(past_key_values)

    # Pure-JAX f32 reference (kernel streams W in bf16 -> bf16 tolerance).
    mask_f = history_attention_mask.astype(jnp.float32)
    masked = jnp.where(mask_f[..., None] != 0.0, token_embeddings, 0.0)
    pooled_ref = masked.sum(axis=1) / mask_f.sum(axis=1, keepdims=True)
    ref = pooled_ref @ transform_w + transform_b

    assert past_key_values.shape == (B, O)
    assert bool(jnp.all(jnp.isfinite(past_key_values)))
    assert jnp.allclose(past_key_values, ref, atol=2e-3, rtol=2e-2)

    print("KERNEL_OK")
</pallas_src>

<mosaic_0001>
module attributes {stable_mosaic.version = 11 : i64} {
  func.func @mean_pool_kernel(%arg0: i32, %arg1: memref<8x8x32xf32, #tpu.memory_space<vmem>>, %arg2: memref<8x8xf32, #tpu.memory_space<vmem>>, %arg3: memref<8x32xf32, #tpu.memory_space<vmem>>) attributes {dimension_semantics = [#tpu.dimension_semantics<parallel>], iteration_bounds = array<i64: 1>, scalar_prefetch = 0 : i64, scratch_operands = 0 : i64, tpu.core_type = #tpu.core_type<tc>, window_params = [{transform_indices = @transform_0, window_bounds = array<i64: 8, 8, 32>}, {transform_indices = @transform_1, window_bounds = array<i64: 8, 8>}, {transform_indices = @transform_2, window_bounds = array<i64: 8, 32>}]} {
    %c0 = arith.constant 0 : index
    %c0_0 = arith.constant 0 : index
    %c0_1 = arith.constant 0 : index
    %0 = vector.load %arg1[%c0, %c0_0, %c0_1] : memref<8x8x32xf32, #tpu.memory_space<vmem>>, vector<8x8x32xf32>
    %c0_2 = arith.constant 0 : index
    %c0_3 = arith.constant 0 : index
    %1 = vector.load %arg2[%c0_2, %c0_3] : memref<8x8xf32, #tpu.memory_space<vmem>>, vector<8x8xf32>
    %2 = vector.shape_cast %1 : vector<8x8xf32> to vector<8x8x1xf32>
    %cst = arith.constant 0.000000e+00 : f32
    %3 = vector.broadcast %cst : f32 to vector<8x8x1xf32>
    %4 = arith.cmpf one, %2, %3 : vector<8x8x1xf32>
    %cst_4 = arith.constant 0.000000e+00 : f32
    %5 = vector.shape_cast %4 : vector<8x8x1xi1> to vector<8x8x1xi1>
    %6 = vector.broadcast %5 : vector<8x8x1xi1> to vector<8x8x32xi1>
    %7 = vector.broadcast %cst_4 : f32 to vector<8x8x32xf32>
    %8 = arith.select %6, %0, %7 : vector<8x8x32xi1>, vector<8x8x32xf32>
    %cst_5 = arith.constant dense<0.000000e+00> : vector<8x32xf32>
    %9 = vector.multi_reduction <add>, %8, %cst_5 [1] : vector<8x8x32xf32> to vector<8x32xf32>
    %cst_6 = arith.constant dense<0.000000e+00> : vector<8xf32>
    %10 = vector.multi_reduction <add>, %1, %cst_6 [1] : vector<8x8xf32> to vector<8xf32>
    %11 = vector.shape_cast %10 : vector<8xf32> to vector<8x1xf32>
    %cst_7 = arith.constant 1.000000e+00 : f32
    %12 = vector.broadcast %cst_7 : f32 to vector<8x1xf32>
    %13 = arith.maximumf %11, %12 : vector<8x1xf32>
    %14 = tpu.reciprocal %13 : vector<8x1xf32> -> vector<8x1xf32>
    %15 = vector.broadcast %14 : vector<8x1xf32> to vector<8x32xf32>
    %16 = arith.mulf %9, %15 : vector<8x32xf32>
    %c0_8 = arith.constant 0 : index
    %c0_9 = arith.constant 0 : index
    %17 = vector.load %arg3[%c0_8, %c0_9] : memref<8x32xf32, #tpu.memory_space<vmem>>, vector<8x32xf32>
    tpu.vector_store %arg3[%c0_8, %c0_9], %16 {strides = array<i32>} : memref<8x32xf32, #tpu.memory_space<vmem>>, vector<8x32xf32>,
    return
  }
  func.func @transform_0(%arg0: i32) -> (i32, i32, i32) {
    %c0_i32 = arith.constant 0 : i32
    %c0_i32_0 = arith.constant 0 : i32
    %c0_i32_1 = arith.constant 0 : i32
    return %arg0, %c0_i32, %c0_i32_0 : i32, i32, i32
  }
  func.func @transform_1(%arg0: i32) -> (i32, i32) {
    %c0_i32 = arith.constant 0 : i32
    %c0_i32_0 = arith.constant 0 : i32
    return %arg0, %c0_i32 : i32, i32
  }
  func.func @transform_2(%arg0: i32) -> (i32, i32) {
    %c0_i32 = arith.constant 0 : i32
    %c0_i32_0 = arith.constant 0 : i32
    return %arg0, %c0_i32 : i32, i32
  }
}

</mosaic_0001>

<llo_original>
// kernel: tpu_custom_call.1
$region0: #{tpu_custom_call.1}
  #allocation0 [shape = 'u32[]', space=smem, size = 0x4, offset = 0x4, fixed_abs, tag = 'smem constant byte address 0x4 - core index']
  #allocation1 [shape = 'u32[144,128]{1,0:T(1,128)}', space=vmem, size = 0x12000, scoped, tag = 'internal scratch']
  %s0 = inlined_call_operand.hbm [shape: f32[8,8,32], index: 0, kind: input, shape index: {}]
  %s1 = inlined_call_operand.hbm [shape: f32[8,8], index: 1, kind: input, shape index: {}]
  %s2 = inlined_call_operand.hbm [shape: f32[8,32], index: 2, kind: output, shape index: {}]
  %s3 = sld [smem:[#allocation0]]
  $region26: #{tpu_custom_call.1} parent=0
    _
  %s5 = ssub.s32 1, %s3
  %s6 = scalar_select 0, %s5, %s3
  $region1: #{tpu_custom_call.1} parent=0
    #allocation2 [shape = 'u8[32768]{0}', space=vmem, size = 0x8000, scoped, tag = 'input window, operand 0, single buffered']
    #allocation3 [shape = 's32[1]{0}', space=sflag, size = 0x4, scoped, tag = 'scoped memory for tpu_custom_call.1']
    #allocation4 [shape = 's32[1]{0}', space=sflag, size = 0x4, scoped, tag = 'scoped memory for tpu_custom_call.1']
    #allocation5 [shape = 'u8[4096]{0}', space=vmem, size = 0x1000, scoped, tag = 'input window, operand 1, single buffered']
    #allocation6 [shape = 's32[1]{0}', space=sflag, size = 0x4, scoped, tag = 'scoped memory for tpu_custom_call.1']
    #allocation7 [shape = 'u8[4096]{0}', space=vmem, size = 0x1000, scoped, tag = 'output window, operand 0, single buffered']
    %7 = vsyncpa [#allocation3], 0
    %8 = vsyncpa [#allocation6], 0
    %9 = vsyncpa [#allocation4], 0
    // Predicated region
    $region2: #{tpu_custom_call.1} parent=1 // pred_check
      _
    $region3: #{tpu_custom_call.1} parent=1 // pred_check_branch
      %11 = sbr.rel (0) target = $region5
    $region4: #{tpu_custom_call.1} parent=1 // pred_region
      %s13 = ssub.s32 1024, 1024
      %14 = vsyncadd [#allocation3], %s13
      %s15 = sshll.u32 [#allocation2], 4
      %s16 = int_to_ptr.vmem [resolvable:$true] %s15
      %21 = dma.hbm_to_vmem [thread:$0]  %s0, 1024, %s16, [#allocation3], 128, 128, 8
    $region5: #{tpu_custom_call.1} parent=1 // pred_fallthru
      _
    // Predicated region
    $region6: #{tpu_custom_call.1} parent=1 // pred_check
      _
    $region7: #{tpu_custom_call.1} parent=1 // pred_check_branch
      %23 = sbr.rel (0) target = $region9
    $region8: #{tpu_custom_call.1} parent=1 // pred_region
      %s25 = ssub.s32 128, 128
      %26 = vsyncadd [#allocation6], %s25
      %s28 = sshll.u32 [#allocation5], 4
      %s29 = int_to_ptr.vmem [resolvable:$true] %s28
      %31 = dma.hbm_to_vmem [thread:$0]  %s1, 128, %s29, [#allocation6]
    $region9: #{tpu_custom_call.1} parent=1 // pred_fallthru
      _
    // Predicated region
    $region10: #{tpu_custom_call.1} parent=1 // pred_check
      _
    $region11: #{tpu_custom_call.1} parent=1 // pred_check_branch
      %33 = sbr.rel (0) target = $region13
    $region12: #{tpu_custom_call.1} parent=1 // pred_region
      %34 = dma.done [#allocation3], 1024
    $region13: #{tpu_custom_call.1} parent=1 // pred_fallthru
      _
    // Predicated region
    $region14: #{tpu_custom_call.1} parent=1 // pred_check
      _
    $region15: #{tpu_custom_call.1} parent=1 // pred_check_branch
      %36 = sbr.rel (0) target = $region17
    $region16: #{tpu_custom_call.1} parent=1 // pred_region
      %37 = dma.done [#allocation6], 128
    $region17: #{tpu_custom_call.1} parent=1 // pred_fallthru
      _
    %v38 = vld [vmem:[#allocation2] sm:$0xff]
    %v39 = vld [vmem:[#allocation2 + $0x8] sm:$0xff]
    %v40 = vld [vmem:[#allocation2 + $0x10] sm:$0xff]
    %v41 = vld [vmem:[#allocation2 + $0x18] sm:$0xff]
    %v42 = vld [vmem:[#allocation2 + $0x20] sm:$0xff]
    %v43 = vld [vmem:[#allocation2 + $0x28] sm:$0xff]
    %v44 = vld [vmem:[#allocation2 + $0x30] sm:$0xff]
    %v45 = vld [vmem:[#allocation2 + $0x38] sm:$0xff]
    %v46 = vld [vmem:[#allocation5] sm:$0xff]
    %v47 = vlaneseq
    %v48 = vshrl.u32 %v47, 7
    %v49 = vsub.s32 0, %v48
    %v50 = vrot.slane %v46, %v49
    %52 = vbcast.lane.b32.xlu0 %v50, 256
    %v53 = vpop.permute.xlu0 %52
    %v54 = vlaneseq
    %v55 = vshrl.u32 %v54, 7
    %v56 = vsub.s32 1, %v55
    %v57 = vrot.slane %v46, %v56
    %59 = vbcast.lane.b32.xlu0 %v57, 256
    %v60 = vpop.permute.xlu0 %59
    %v61 = vlaneseq
    %v62 = vshrl.u32 %v61, 7
    %v63 = vsub.s32 2, %v62
    %v64 = vrot.slane %v46, %v63
    %66 = vbcast.lane.b32.xlu0 %v64, 256
    %v67 = vpop.permute.xlu0 %66
    %v68 = vlaneseq
    %v69 = vshrl.u32 %v68, 7
    %v70 = vsub.s32 3, %v69
    %v71 = vrot.slane %v46, %v70
    %73 = vbcast.lane.b32.xlu0 %v71, 256
    %v74 = vpop.permute.xlu0 %73
    %v75 = vlaneseq
    %v76 = vshrl.u32 %v75, 7
    %v77 = vsub.s32 4, %v76
    %v78 = vrot.slane %v46, %v77
    %80 = vbcast.lane.b32.xlu0 %v78, 256
    %v81 = vpop.permute.xlu0 %80
    %v82 = vlaneseq
    %v83 = vshrl.u32 %v82, 7
    %v84 = vsub.s32 5, %v83
    %v85 = vrot.slane %v46, %v84
    %87 = vbcast.lane.b32.xlu0 %v85, 256
    %v88 = vpop.permute.xlu0 %87
    %v89 = vlaneseq
    %v90 = vshrl.u32 %v89, 7
    %v91 = vsub.s32 6, %v90
    %v92 = vrot.slane %v46, %v91
    %94 = vbcast.lane.b32.xlu0 %v92, 256
    %v95 = vpop.permute.xlu0 %94
    %v96 = vlaneseq
    %v97 = vshrl.u32 %v96, 7
    %v98 = vsub.s32 7, %v97
    %v99 = vrot.slane %v46, %v98
    %101 = vbcast.lane.b32.xlu0 %v99, 256
    %v102 = vpop.permute.xlu0 %101
    %vm103 = vcmp.ne.f32.partialorder %v53, 0.0
    %vm104 = vcmp.ne.f32.partialorder %v60, 0.0
    %vm105 = vcmp.ne.f32.partialorder %v67, 0.0
    %vm106 = vcmp.ne.f32.partialorder %v74, 0.0
    %vm107 = vcmp.ne.f32.partialorder %v81, 0.0
    %vm108 = vcmp.ne.f32.partialorder %v88, 0.0
    %vm109 = vcmp.ne.f32.partialorder %v95, 0.0
    %vm110 = vcmp.ne.f32.partialorder %v102, 0.0
    %v111 = vsel %vm103, 1, 0
    %v112 = vsel %vm104, 1, 0
    %v113 = vsel %vm105, 1, 0
    %v114 = vsel %vm106, 1, 0
    %v115 = vsel %vm107, 1, 0
    %v116 = vsel %vm108, 1, 0
    %v117 = vsel %vm109, 1, 0
    %v118 = vsel %vm110, 1, 0
    %vm119 = vcmp.eq.s32.totalorder %v111, 1
    %vm120 = vcmp.eq.s32.totalorder %v112, 1
    %vm121 = vcmp.eq.s32.totalorder %v113, 1
    %vm122 = vcmp.eq.s32.totalorder %v114, 1
    %vm123 = vcmp.eq.s32.totalorder %v115, 1
    %vm124 = vcmp.eq.s32.totalorder %v116, 1
    %vm125 = vcmp.eq.s32.totalorder %v117, 1
    %vm126 = vcmp.eq.s32.totalorder %v118, 1
    %v127 = vsel %vm119, %v38, 0.0
    %v128 = vsel %vm120, %v39, 0.0
    %v129 = vsel %vm121, %v40, 0.0
    %v130 = vsel %vm122, %v41, 0.0
    %v131 = vsel %vm123, %v42, 0.0
    %v132 = vsel %vm124, %v43, 0.0
    %v133 = vsel %vm125, %v44, 0.0
    %v134 = vsel %vm126, %v45, 0.0
    %vm135 = vcmask 261120
    %v136 = vsel %vm135, %v127, 0.0
    %v137 = vrot.slane %v136, 4
    %v138 = vadd.f32 %v136, %v137
    %v139 = vrot.slane %v138, 2
    %v140 = vadd.f32 %v138, %v139
    %v141 = vrot.slane %v140, 1
    %v142 = vadd.f32 %v140, %v141
    %v143 = vsel %vm135, %v128, 0.0
    %v144 = vrot.slane %v143, 4
    %v145 = vadd.f32 %v143, %v144
    %v146 = vrot.slane %v145, 2
    %v147 = vadd.f32 %v145, %v146
    %v148 = vrot.slane %v147, 1
    %v149 = vadd.f32 %v147, %v148
    %v150 = vsel %vm135, %v129, 0.0
    %v151 = vrot.slane %v150, 4
    %v152 = vadd.f32 %v150, %v151
    %v153 = vrot.slane %v152, 2
    %v154 = vadd.f32 %v152, %v153
    %v155 = vrot.slane %v154, 1
    %v156 = vadd.f32 %v154, %v155
    %v157 = vsel %vm135, %v130, 0.0
    %v158 = vrot.slane %v157, 4
    %v159 = vadd.f32 %v157, %v158
    %v160 = vrot.slane %v159, 2
    %v161 = vadd.f32 %v159, %v160
    %v162 = vrot.slane %v161, 1
    %v163 = vadd.f32 %v161, %v162
    %v164 = vsel %vm135, %v131, 0.0
    %v165 = vrot.slane %v164, 4
    %v166 = vadd.f32 %v164, %v165
    %v167 = vrot.slane %v166, 2
    %v168 = vadd.f32 %v166, %v167
    %v169 = vrot.slane %v168, 1
    %v170 = vadd.f32 %v168, %v169
    %v171 = vsel %vm135, %v132, 0.0
    %v172 = vrot.slane %v171, 4
    %v173 = vadd.f32 %v171, %v172
    %v174 = vrot.slane %v173, 2
    %v175 = vadd.f32 %v173, %v174
    %v176 = vrot.slane %v175, 1
    %v177 = vadd.f32 %v175, %v176
    %v178 = vsel %vm135, %v133, 0.0
    %v179 = vrot.slane %v178, 4
    %v180 = vadd.f32 %v178, %v179
    %v181 = vrot.slane %v180, 2
    %v182 = vadd.f32 %v180, %v181
    %v183 = vrot.slane %v182, 1
    %v184 = vadd.f32 %v182, %v183
    %v185 = vsel %vm135, %v134, 0.0
    %v186 = vrot.slane %v185, 4
    %v187 = vadd.f32 %v185, %v186
    %v188 = vrot.slane %v187, 2
    %v189 = vadd.f32 %v187, %v188
    %v190 = vrot.slane %v189, 1
    %v191 = vadd.f32 %v189, %v190
    %vm192 = vcmask 64512
    %v193 = vsel %vm192, %v46, 0.0
    %194 = vadd.xlane.f32.xlu0 %v193
    %v195 = vpop.xlane.xlu0 %194
    %v196 = vmax.f32 %v195, 1.0
    %v197 = vrcp.pop %v196
    %v199 = vrot.slane %v197, 1
    %v200 = vrot.slane %v197, 2
    %v201 = vrot.slane %v197, 3
    %v202 = vrot.slane %v197, 4
    %v203 = vrot.slane %v197, 5
    %v204 = vrot.slane %v197, 6
    %v205 = vrot.slane %v197, 7
    %v214 = vmul.f32 %v142, %v197
    %v215 = vmul.f32 %v149, %v199
    %v216 = vmul.f32 %v156, %v200
    %v217 = vmul.f32 %v163, %v201
    %v218 = vmul.f32 %v170, %v202
    %v219 = vmul.f32 %v177, %v203
    %v220 = vmul.f32 %v184, %v204
    %v221 = vmul.f32 %v191, %v205
    %v230 = vrot.slane %v215, 7
    %vm231 = vcmask 1041409
    %v232 = vsel %vm231, %v230, %v214
    %v233 = vrot.slane %v216, 6
    %vm234 = vcmask 1042434
    %v235 = vsel %vm234, %v233, %v232
    %v236 = vrot.slane %v217, 5
    %vm237 = vcmask 1043459
    %v238 = vsel %vm237, %v236, %v235
    %v239 = vrot.slane %v218, 4
    %vm240 = vcmask 1044484
    %v241 = vsel %vm240, %v239, %v238
    %v242 = vrot.slane %v219, 3
    %vm243 = vcmask 1045509
    %v244 = vsel %vm243, %v242, %v241
    %v245 = vrot.slane %v220, 2
    %vm246 = vcmask 1046534
    %v247 = vsel %vm246, %v245, %v244
    %v248 = vrot.slane %v221, 1
    %vm249 = vcmask 1047559
    %v250 = vsel %vm249, %v248, %v247
    %252 = vst.msk [vmem:[#allocation7] sm:$0xff] %vm135, %v250
    // Predicated region
    $region18: #{tpu_custom_call.1} parent=1 // pred_check
      _
    $region19: #{tpu_custom_call.1} parent=1 // pred_check_branch
      %254 = sbr.rel (0) target = $region21
    $region20: #{tpu_custom_call.1} parent=1 // pred_region
      %s256 = ssub.s32 128, 128
      %257 = vsyncadd [#allocation4], %s256
      %s259 = sshll.u32 [#allocation7], 4
      %s260 = int_to_ptr.vmem [resolvable:$true] %s259
      %262 = dma.vmem_to_hbm [thread:$0]  %s260, 128, %s2, [#allocation4]
    $region21: #{tpu_custom_call.1} parent=1 // pred_fallthru
      _
    // Predicated region
    $region22: #{tpu_custom_call.1} parent=1 // pred_check
      _
    $region23: #{tpu_custom_call.1} parent=1 // pred_check_branch
      %264 = sbr.rel (0) target = $region25
    $region24: #{tpu_custom_call.1} parent=1 // pred_region
      %265 = dma.done [#allocation4], 128
    $region25: #{tpu_custom_call.1} parent=1 // pred_fallthru
      _
    %266 = vsyncpa [#allocation3], 1
    %267 = vsyncpa [#allocation6], 1
    %268 = vsyncpa [#allocation4], 1

</llo_original>
